<compile_context>
chip_gen: v7x
topology: tpu7x:2x2x1
jax: 0.10.0
libtpu: 0.0.40
codegen_flags: <defaults>
</compile_context>

<pallas_src>
import jax
import jax.numpy as jnp
from jax import lax
from jax.experimental import pallas as pl
from jax.experimental.pallas import tpu as pltpu

HIDDEN = 64
FUSED = 2 * HIDDEN       # actor + critic hidden units packed along the lane axis
OUT_ROWS = 8             # output sublanes; row 0 = mean, row 1 = value, rest zero
MAX_TB = 512             # batch tile (lane axis of output); multiple of 128


def _round_up(x, m):
    return ((x + m - 1) // m) * m


def _fused_mlp_kernel(x_ref, w1_ref, w2_ref, w3t_ref, b12_ref, b3t_ref, out_ref):
    """One batch tile of the fused actor+critic MLP.

    x_ref   : (TB, D)       state tile (f32)
    w1_ref  : (D, 128)      [actor_w1 | critic_w1]
    w2_ref  : (128, 128)    blkdiag(actor_w2, critic_w2)
    w3t_ref : (8, 128)      row 0 = actor head, row 1 = critic head, rest zero
    b12_ref : (2, 128) f32  row 0 = fused b1, row 1 = fused b2
    b3t_ref : (8, 1)   f32  sublane 0 = actor b3, sublane 1 = critic b3
    out_ref : (8, TB)  f32  transposed lane-dense output slab
    """
    w_dtype = w1_ref.dtype
    x = x_ref[...]

    b1 = b12_ref[0:1, :]
    b2 = b12_ref[1:2, :]

    # Cast at the MXU inputs only; bias add + ReLU stay in f32 (v5e VPU has no bf16).
    h = jnp.dot(x.astype(w_dtype), w1_ref[...],
                preferred_element_type=jnp.float32) + b1
    h = jnp.maximum(h, 0.0)
    h = jnp.dot(h.astype(w_dtype), w2_ref[...],
                preferred_element_type=jnp.float32) + b2
    h = jnp.maximum(h, 0.0)

    # Transposed head: contract the 128-wide hidden axis of both operands
    # (same A·Bᵀ pattern the MXU uses for q @ kᵀ) -> (8, TB) result.
    out_t = lax.dot_general(
        w3t_ref[...], h.astype(w_dtype),
        dimension_numbers=(((1,), (1,)), ((), ())),
        preferred_element_type=jnp.float32)

    out_ref[...] = (out_t + b3t_ref[...]).astype(out_ref.dtype)


def pack_params(params, weight_dtype=jnp.float32):
    """Pack the 13 PyTorch-style tensors into 5 fused arrays. Call ONCE."""
    (aw1, ab1, aw2, ab2, aw3, ab3,
     cw1, cb1, cw2, cb2, cw3, cb3, log_std) = params

    w1 = jnp.concatenate([aw1, cw1], axis=1)                              # (D, 128)

    w2 = jnp.zeros((FUSED, FUSED), jnp.float32)
    w2 = w2.at[:HIDDEN, :HIDDEN].set(aw2).at[HIDDEN:, HIDDEN:].set(cw2)   # (128,128)

    w3t = jnp.zeros((OUT_ROWS, FUSED), jnp.float32)                       # (8, 128)
    w3t = w3t.at[0, :HIDDEN].set(aw3[:, 0]).at[1, HIDDEN:].set(cw3[:, 0])

    b12 = jnp.concatenate([
        jnp.concatenate([ab1, cb1], axis=1),                              # (1, 128)
        jnp.concatenate([ab2, cb2], axis=1),                              # (1, 128)
    ], axis=0)                                                            # (2, 128)

    b3t = jnp.zeros((OUT_ROWS, 1), jnp.float32)
    b3t = b3t.at[0, 0].set(ab3[0, 0]).at[1, 0].set(cb3[0, 0])             # (8, 1)

    return {
        "w1": w1.astype(weight_dtype),
        "w2": w2.astype(weight_dtype),
        "w3t": w3t.astype(weight_dtype),
        "b12": b12.astype(jnp.float32),     # elementwise work stays f32
        "b3t": b3t.astype(jnp.float32),
        "log_std": log_std.astype(jnp.float32),
    }


@jax.jit
def actor_critic_forward(state, packed):
    """Returns (action_mean [B,1], action_std [1], state_value [B,1])."""
    B, D = state.shape
    if B <= MAX_TB:
        TB = _round_up(B, 8)        # single tile; block == full array is allowed
        B_pad = TB
    else:
        TB = MAX_TB                 # multiple of 128 -> unmasked lane-dense stores
        B_pad = _round_up(B, TB)

    x = state.astype(jnp.float32)
    if B_pad != B:
        x = jnp.pad(x, ((0, B_pad - B), (0, 0)))

    out = pl.pallas_call(
        _fused_mlp_kernel,
        out_shape=jax.ShapeDtypeStruct((OUT_ROWS, B_pad), jnp.float32),
        grid_spec=pltpu.PrefetchScalarGridSpec(
            num_scalar_prefetch=0,
            grid=(B_pad // TB,),
            in_specs=[
                pl.BlockSpec((TB, D), lambda i: (i, 0)),            # batch-tiled input
                pl.BlockSpec((D, FUSED), lambda i: (0, 0)),         # resident weights
                pl.BlockSpec((FUSED, FUSED), lambda i: (0, 0)),
                pl.BlockSpec((OUT_ROWS, FUSED), lambda i: (0, 0)),
                pl.BlockSpec((2, FUSED), lambda i: (0, 0)),         # bias rows 1,2
                pl.BlockSpec((OUT_ROWS, 1), lambda i: (0, 0)),      # head bias column
            ],
            out_specs=pl.BlockSpec((OUT_ROWS, TB), lambda i: (0, i)),
        ),
        compiler_params=pltpu.CompilerParams(
            dimension_semantics=("parallel",),      # megacore split on v7x
            vmem_limit_bytes=32 * 1024 * 1024,      # explicit; tiles fit with room
        ),
    )(x, packed["w1"], packed["w2"], packed["w3t"], packed["b12"], packed["b3t"])

    action_mean = out[0, :B, None]
    state_value = out[1, :B, None]
    action_std = jnp.exp(packed["log_std"])         # scalar transform, glue JAX
    return action_mean, action_std, state_value


def init_params(key, state_dim, action_std):
    """Deterministic init mimicking PyTorch Linear default U(-1/sqrt(fan_in), ...)."""
    def linear(k, fan_in, fan_out):
        kw, kb = jax.random.split(k)
        bound = 1.0 / jnp.sqrt(jnp.float32(fan_in))
        w = jax.random.uniform(kw, (fan_in, fan_out), jnp.float32, -bound, bound)
        b = jax.random.uniform(kb, (1, fan_out), jnp.float32, -bound, bound)
        return w, b

    keys = jax.random.split(key, 6)
    aw1, ab1 = linear(keys[0], state_dim, HIDDEN)
    aw2, ab2 = linear(keys[1], HIDDEN, HIDDEN)
    aw3, ab3 = linear(keys[2], HIDDEN, 1)
    cw1, cb1 = linear(keys[3], state_dim, HIDDEN)
    cw2, cb2 = linear(keys[4], HIDDEN, HIDDEN)
    cw3, cb3 = linear(keys[5], HIDDEN, 1)
    log_std = jnp.log(jnp.array([action_std], dtype=jnp.float32))
    return (aw1, ab1, aw2, ab2, aw3, ab3,
            cw1, cb1, cw2, cb2, cw3, cb3, log_std)


def reference_forward(state, params):
    (aw1, ab1, aw2, ab2, aw3, ab3,
     cw1, cb1, cw2, cb2, cw3, cb3, log_std) = params

    def mlp(x, w1, b1, w2, b2, w3, b3):
        h = jnp.maximum(x @ w1 + b1, 0.0)
        h = jnp.maximum(h @ w2 + b2, 0.0)
        return h @ w3 + b3

    return (mlp(state, aw1, ab1, aw2, ab2, aw3, ab3),
            jnp.exp(log_std),
            mlp(state, cw1, cb1, cw2, cb2, cw3, cb3))


if __name__ == "__main__":
    key = jax.random.PRNGKey(0)
    k_param, k_state, k_big = jax.random.split(key, 3)

    batch = 8          # small demo batch (single grid step)
    state_dim = 16
    action_std_init = 0.5

    params = init_params(k_param, state_dim, action_std_init)
    state = jax.random.normal(k_state, (batch, state_dim), dtype=jnp.float32)

    ref_mean, ref_std, ref_value = reference_forward(state, params)

    # --- f32 weight path: parity with the reference MLPs -----------------------
    packed_f32 = pack_params(params, weight_dtype=jnp.float32)
    mean, std, value = actor_critic_forward(state, packed_f32)
    jax.block_until_ready((mean, std, value))

    assert mean.shape == (batch, 1)
    assert std.shape == (1,)
    assert value.shape == (batch, 1)
    assert jnp.allclose(mean, ref_mean, atol=1e-4, rtol=1e-4)
    assert jnp.allclose(std, ref_std, atol=1e-6)
    assert jnp.allclose(value, ref_value, atol=1e-4, rtol=1e-4)

    # --- multi-tile grid path (B > MAX_TB: tiling + batch padding) -------------
    big_batch = 600
    big_state = jax.random.normal(k_big, (big_batch, state_dim), dtype=jnp.float32)
    big_ref_mean, _, big_ref_value = reference_forward(big_state, params)
    big_mean, _, big_value = actor_critic_forward(big_state, packed_f32)
    jax.block_until_ready((big_mean, big_value))
    assert big_mean.shape == (big_batch, 1)
    assert big_value.shape == (big_batch, 1)
    assert jnp.allclose(big_mean, big_ref_mean, atol=1e-4, rtol=1e-4)
    assert jnp.allclose(big_value, big_ref_value, atol=1e-4, rtol=1e-4)

    # --- bf16 weight path (halves weight HBM/VMEM traffic on v6e/v7x) ----------
    packed_bf16 = pack_params(params, weight_dtype=jnp.bfloat16)
    mean_b, std_b, value_b = actor_critic_forward(state, packed_bf16)
    jax.block_until_ready((mean_b, std_b, value_b))
    assert jnp.allclose(mean_b, ref_mean, atol=5e-2, rtol=5e-2)
    assert jnp.allclose(value_b, ref_value, atol=5e-2, rtol=5e-2)

    print("KERNEL_OK")
</pallas_src>

<mosaic_0001>
module attributes {stable_mosaic.version = 11 : i64} {
  func.func @_fused_mlp_kernel(%arg0: i32, %arg1: memref<8x16xf32, #tpu.memory_space<vmem>>, %arg2: memref<16x128xf32, #tpu.memory_space<vmem>>, %arg3: memref<128x128xf32, #tpu.memory_space<vmem>>, %arg4: memref<8x128xf32, #tpu.memory_space<vmem>>, %arg5: memref<2x128xf32, #tpu.memory_space<vmem>>, %arg6: memref<8x1xf32, #tpu.memory_space<vmem>>, %arg7: memref<8x8xf32, #tpu.memory_space<vmem>>) attributes {dimension_semantics = [#tpu.dimension_semantics<parallel>], iteration_bounds = array<i64: 1>, scalar_prefetch = 0 : i64, scratch_operands = 0 : i64, tpu.core_type = #tpu.core_type<tc>, window_params = [{transform_indices = @transform_0, window_bounds = array<i64: 8, 16>}, {pipeline_mode = #tpu.pipeline_mode<synchronous>, transform_indices = @transform_1, window_bounds = array<i64: 16, 128>}, {pipeline_mode = #tpu.pipeline_mode<synchronous>, transform_indices = @transform_2, window_bounds = array<i64: 128, 128>}, {pipeline_mode = #tpu.pipeline_mode<synchronous>, transform_indices = @transform_3, window_bounds = array<i64: 8, 128>}, {pipeline_mode = #tpu.pipeline_mode<synchronous>, transform_indices = @transform_4, window_bounds = array<i64: 2, 128>}, {pipeline_mode = #tpu.pipeline_mode<synchronous>, transform_indices = @transform_5, window_bounds = array<i64: 8, 1>}, {transform_indices = @transform_6, window_bounds = array<i64: 8, 8>}]} {
    %c0 = arith.constant 0 : index
    %c0_0 = arith.constant 0 : index
    %0 = vector.load %arg1[%c0, %c0_0] : memref<8x16xf32, #tpu.memory_space<vmem>>, vector<8x16xf32>
    %c0_1 = arith.constant 0 : index
    %c0_2 = arith.constant 0 : index
    %1 = vector.load %arg5[%c0_1, %c0_2] : memref<2x128xf32, #tpu.memory_space<vmem>>, vector<1x128xf32>
    %c1 = arith.constant 1 : index
    %c0_3 = arith.constant 0 : index
    %2 = vector.load %arg5[%c1, %c0_3] : memref<2x128xf32, #tpu.memory_space<vmem>>, vector<1x128xf32>
    %c0_4 = arith.constant 0 : index
    %c0_5 = arith.constant 0 : index
    %3 = vector.load %arg2[%c0_4, %c0_5] : memref<16x128xf32, #tpu.memory_space<vmem>>, vector<16x128xf32>
    %cst = arith.constant dense<0.000000e+00> : vector<8x128xf32>
    %4 = tpu.matmul %0, %3, %cst {dimension_numbers = #tpu.dot_dimension_numbers<[1], [0], [0], [1], [0, 0, 1, 1], [], []>} : vector<8x16xf32>, vector<16x128xf32>, vector<8x128xf32> -> vector<8x128xf32>
    %5 = vector.broadcast %1 : vector<1x128xf32> to vector<8x128xf32>
    %6 = arith.addf %4, %5 : vector<8x128xf32>
    %cst_6 = arith.constant 0.000000e+00 : f32
    %7 = vector.broadcast %cst_6 : f32 to vector<8x128xf32>
    %8 = arith.maximumf %6, %7 : vector<8x128xf32>
    %c0_7 = arith.constant 0 : index
    %c0_8 = arith.constant 0 : index
    %9 = vector.load %arg3[%c0_7, %c0_8] : memref<128x128xf32, #tpu.memory_space<vmem>>, vector<128x128xf32>
    %cst_9 = arith.constant dense<0.000000e+00> : vector<8x128xf32>
    %10 = tpu.matmul %8, %9, %cst_9 {dimension_numbers = #tpu.dot_dimension_numbers<[1], [0], [0], [1], [0, 0, 1, 1], [], []>} : vector<8x128xf32>, vector<128x128xf32>, vector<8x128xf32> -> vector<8x128xf32>
    %11 = vector.broadcast %2 : vector<1x128xf32> to vector<8x128xf32>
    %12 = arith.addf %10, %11 : vector<8x128xf32>
    %cst_10 = arith.constant 0.000000e+00 : f32
    %13 = vector.broadcast %cst_10 : f32 to vector<8x128xf32>
    %14 = arith.maximumf %12, %13 : vector<8x128xf32>
    %c0_11 = arith.constant 0 : index
    %c0_12 = arith.constant 0 : index
    %15 = vector.load %arg4[%c0_11, %c0_12] : memref<8x128xf32, #tpu.memory_space<vmem>>, vector<8x128xf32>
    %cst_13 = arith.constant dense<0.000000e+00> : vector<8x8xf32>
    %16 = tpu.matmul %15, %14, %cst_13 {dimension_numbers = #tpu.dot_dimension_numbers<[1], [1], [0], [0], [0, 0, 1, 0], [], []>} : vector<8x128xf32>, vector<8x128xf32>, vector<8x8xf32> -> vector<8x8xf32>
    %c0_14 = arith.constant 0 : index
    %c0_15 = arith.constant 0 : index
    %17 = vector.load %arg6[%c0_14, %c0_15] : memref<8x1xf32, #tpu.memory_space<vmem>>, vector<8x1xf32>
    %18 = vector.broadcast %17 : vector<8x1xf32> to vector<8x8xf32>
    %19 = arith.addf %16, %18 : vector<8x8xf32>
    %c0_16 = arith.constant 0 : index
    %c0_17 = arith.constant 0 : index
    %20 = vector.load %arg7[%c0_16, %c0_17] : memref<8x8xf32, #tpu.memory_space<vmem>>, vector<8x8xf32>
    tpu.vector_store %arg7[%c0_16, %c0_17], %19 {strides = array<i32>} : memref<8x8xf32, #tpu.memory_space<vmem>>, vector<8x8xf32>,
    return
  }
  func.func @transform_0(%arg0: i32) -> (i32, i32) {
    %c0_i32 = arith.constant 0 : i32
    %c0_i32_0 = arith.constant 0 : i32
    return %arg0, %c0_i32 : i32, i32
  }
  func.func @transform_1(%arg0: i32) -> (i32, i32) {
    %c0_i32 = arith.constant 0 : i32
    %c0_i32_0 = arith.constant 0 : i32
    %c0_i32_1 = arith.constant 0 : i32
    return %c0_i32, %c0_i32_0 : i32, i32
  }
  func.func @transform_2(%arg0: i32) -> (i32, i32) {
    %c0_i32 = arith.constant 0 : i32
    %c0_i32_0 = arith.constant 0 : i32
    %c0_i32_1 = arith.constant 0 : i32
    return %c0_i32, %c0_i32_0 : i32, i32
  }
  func.func @transform_3(%arg0: i32) -> (i32, i32) {
    %c0_i32 = arith.constant 0 : i32
    %c0_i32_0 = arith.constant 0 : i32
    %c0_i32_1 = arith.constant 0 : i32
    return %c0_i32, %c0_i32_0 : i32, i32
  }
  func.func @transform_4(%arg0: i32) -> (i32, i32) {
    %c0_i32 = arith.constant 0 : i32
    %c0_i32_0 = arith.constant 0 : i32
    %c0_i32_1 = arith.constant 0 : i32
    return %c0_i32, %c0_i32_0 : i32, i32
  }
  func.func @transform_5(%arg0: i32) -> (i32, i32) {
    %c0_i32 = arith.constant 0 : i32
    %c0_i32_0 = arith.constant 0 : i32
    %c0_i32_1 = arith.constant 0 : i32
    return %c0_i32, %c0_i32_0 : i32, i32
  }
  func.func @transform_6(%arg0: i32) -> (i32, i32) {
    %c0_i32 = arith.constant 0 : i32
    %c0_i32_0 = arith.constant 0 : i32
    return %c0_i32, %arg0 : i32, i32
  }
}

</mosaic_0001>

<llo_original>
// kernel: actor_critic_forward.1
$region0: #{actor_critic_forward.1}
  #allocation0 [shape = 'u32[]', space=smem, size = 0x4, offset = 0x4, fixed_abs, tag = 'smem constant byte address 0x4 - core index']
  #allocation1 [shape = 'u32[144,128]{1,0:T(1,128)}', space=vmem, size = 0x12000, scoped, tag = 'internal scratch']
  %s0 = inlined_call_operand.vmem [shape: f32[8,16], index: 0, kind: input, shape index: {}]
  %s1 = inlined_call_operand.vmem [shape: f32[16,128], index: 1, kind: input, shape index: {}]
  %s2 = inlined_call_operand.hbm [shape: f32[128,128], index: 2, kind: input, shape index: {}]
  %s3 = inlined_call_operand.hbm [shape: f32[8,128], index: 3, kind: input, shape index: {}]
  %s4 = inlined_call_operand.vmem [shape: f32[2,128], index: 4, kind: input, shape index: {}]
  %s5 = inlined_call_operand.vmem [shape: f32[8,1], index: 5, kind: input, shape index: {}]
  %s6 = inlined_call_operand.vmem [shape: f32[8,8], index: 6, kind: output, shape index: {}]
  %s7 = sld [smem:[#allocation0]]
  $region42: #{actor_critic_forward.1} parent=0
    _
  %s9 = ssub.s32 1, %s7
  %s10 = scalar_select 0, %s9, %s7
  $region1: #{actor_critic_forward.1} parent=0
    #allocation2 [shape = 'u8[65536]{0}', space=vmem, size = 0x10000, scoped, tag = 'input window, operand 2, single buffered']
    #allocation3 [shape = 's32[1]{0}', space=sflag, size = 0x4, scoped, tag = 'scoped memory for actor_critic_forward.1']
    #allocation4 [shape = 'u8[4096]{0}', space=vmem, size = 0x1000, scoped, tag = 'input window, operand 3, single buffered']
    #allocation5 [shape = 's32[1]{0}', space=sflag, size = 0x4, scoped, tag = 'scoped memory for actor_critic_forward.1']
    %11 = vsyncpa [#allocation3], 0
    %12 = vsyncpa [#allocation5], 0
    // Predicated region
    $region2: #{actor_critic_forward.1} parent=1 // pred_check
      _
    $region3: #{actor_critic_forward.1} parent=1 // pred_check_branch
      %14 = sbr.rel (0) target = $region5
    $region4: #{actor_critic_forward.1} parent=1 // pred_region
      _
    $region5: #{actor_critic_forward.1} parent=1 // pred_fallthru
      _
    // Predicated region
    $region6: #{actor_critic_forward.1} parent=1 // pred_check
      _
    $region7: #{actor_critic_forward.1} parent=1 // pred_check_branch
      %16 = sbr.rel (0) target = $region9
    $region8: #{actor_critic_forward.1} parent=1 // pred_region
      _
    $region9: #{actor_critic_forward.1} parent=1 // pred_fallthru
      _
    // Predicated region
    $region10: #{actor_critic_forward.1} parent=1 // pred_check
      _
    $region11: #{actor_critic_forward.1} parent=1 // pred_check_branch
      %18 = sbr.rel (0) target = $region13
    $region12: #{actor_critic_forward.1} parent=1 // pred_region
      %s20 = ssub.s32 2048, 2048
      %21 = vsyncadd [#allocation3], %s20
      %s22 = sshll.u32 [#allocation2], 4
      %s23 = int_to_ptr.vmem [resolvable:$true] %s22
      %28 = dma.hbm_to_vmem [thread:$0]  %s2, 2048, %s23, [#allocation3], 128, 128, 8
    $region13: #{actor_critic_forward.1} parent=1 // pred_fallthru
      _
    // Predicated region
    $region14: #{actor_critic_forward.1} parent=1 // pred_check
      _
    $region15: #{actor_critic_forward.1} parent=1 // pred_check_branch
      %30 = sbr.rel (0) target = $region17
    $region16: #{actor_critic_forward.1} parent=1 // pred_region
      %s32 = ssub.s32 128, 128
      %33 = vsyncadd [#allocation5], %s32
      %s35 = sshll.u32 [#allocation4], 4
      %s36 = int_to_ptr.vmem [resolvable:$true] %s35
      %38 = dma.hbm_to_vmem [thread:$0]  %s3, 128, %s36, [#allocation5]
    $region17: #{actor_critic_forward.1} parent=1 // pred_fallthru
      _
    // Predicated region
    $region18: #{actor_critic_forward.1} parent=1 // pred_check
      _
    $region19: #{actor_critic_forward.1} parent=1 // pred_check_branch
      %40 = sbr.rel (0) target = $region21
    $region20: #{actor_critic_forward.1} parent=1 // pred_region
      _
    $region21: #{actor_critic_forward.1} parent=1 // pred_fallthru
      _
    // Predicated region
    $region22: #{actor_critic_forward.1} parent=1 // pred_check
      _
    $region23: #{actor_critic_forward.1} parent=1 // pred_check_branch
      %42 = sbr.rel (0) target = $region25
    $region24: #{actor_critic_forward.1} parent=1 // pred_region
      _
    $region25: #{actor_critic_forward.1} parent=1 // pred_fallthru
      _
    // Predicated region
    $region26: #{actor_critic_forward.1} parent=1 // pred_check
      _
    $region27: #{actor_critic_forward.1} parent=1 // pred_check_branch
      %44 = sbr.rel (0) target = $region29
    $region28: #{actor_critic_forward.1} parent=1 // pred_region
      %45 = dma.done [#allocation3], 2048
    $region29: #{actor_critic_forward.1} parent=1 // pred_fallthru
      _
    // Predicated region
    $region30: #{actor_critic_forward.1} parent=1 // pred_check
      _
    $region31: #{actor_critic_forward.1} parent=1 // pred_check_branch
      %47 = sbr.rel (0) target = $region33
    $region32: #{actor_critic_forward.1} parent=1 // pred_region
      %48 = dma.done [#allocation5], 128
    $region33: #{actor_critic_forward.1} parent=1 // pred_fallthru
      _
    %v49 = vld [vmem:[%s0] sm:$0xff]
    %v50 = vld [vmem:[%s4] sm:$0x1]
    %v51 = vld [vmem:[%s4 + $0x1] sm:$0x1]
    %v52 = vld [vmem:[%s1] sm:$0xff]
    %v53 = vld [vmem:[%s1 + $0x8] sm:$0xff]
    %v54 = vlaneseq
    %v55 = vshrl.u32 %v54, 7
    %v56 = vsub.s32 0, %v55
    %v57 = vrot.slane %v50, %v56
    %vm58 = vcmask 130048
    %v60 = vsel %vm58, %v49, 0
    %62 = vmatprep.subr.mxu0 0.0
    %63 = vmatpush1.msra.mxu0 %v52
    %64 = vmatprep.subr.mxu0 0.0
    %65 = vmatpush1.msra.mxu0 %v53
    %66 = vmatprep.subr.mxu0 0.0
    %67 = vmatpush1.msra.mxu0 0.0
    %68 = vmatprep.subr.mxu0 0.0
    %69 = vmatpush1.msra.mxu0 0.0
    %70 = vmatprep.subr.mxu0 0.0
    %71 = vmatpush1.msra.mxu0 0.0
    %72 = vmatprep.subr.mxu0 0.0
    %73 = vmatpush1.msra.mxu0 0.0
    %74 = vmatprep.subr.mxu0 0.0
    %75 = vmatpush1.msra.mxu0 0.0
    %76 = vmatprep.subr.mxu0 0.0
    %77 = vmatpush1.msra.mxu0 0.0
    %78 = vmatprep.subr.mxu0 0.0
    %79 = vmatpush1.msra.mxu0 0.0
    %80 = vmatprep.subr.mxu0 0.0
    %81 = vmatpush1.msra.mxu0 0.0
    %82 = vmatprep.subr.mxu0 0.0
    %83 = vmatpush1.msra.mxu0 0.0
    %84 = vmatprep.subr.mxu0 0.0
    %85 = vmatpush1.msra.mxu0 0.0
    %86 = vmatprep.subr.mxu0 0.0
    %87 = vmatpush1.msra.mxu0 0.0
    %88 = vmatprep.subr.mxu0 0.0
    %89 = vmatpush1.msra.mxu0 0.0
    %90 = vmatprep.subr.mxu0 0.0
    %91 = vmatpush1.msra.mxu0 0.0
    %92 = vmatprep.subr.mxu0 0.0
    %93 = vmatpush1.msra.mxu0 0.0
    %94 = vmatprep.subr.mxu0 0.0
    %95 = vmatpush1.msra.mxu0 0.0
    %96 = vmatprep.subr.mxu0 0.0
    %97 = vmatpush1.msra.mxu0 0.0
    %98 = vmatprep.subr.mxu0 0.0
    %99 = vmatpush1.msra.mxu0 0.0
    %100 = vmatprep.subr.mxu0 0.0
    %101 = vmatpush1.msra.mxu0 0.0
    %102 = vmatprep.subr.mxu0 0.0
    %103 = vmatpush1.msra.mxu0 0.0
    %104 = vmatprep.subr.mxu0 0.0
    %105 = vmatpush1.msra.mxu0 0.0
    %106 = vmatprep.subr.mxu0 0.0
    %107 = vmatpush1.msra.mxu0 0.0
    %108 = vmatprep.subr.mxu0 0.0
    %109 = vmatpush1.msra.mxu0 0.0
    %110 = vmatprep.subr.mxu0 0.0
    %111 = vmatpush1.msra.mxu0 0.0
    %112 = vmatprep.subr.mxu0 0.0
    %113 = vmatpush1.msra.mxu0 0.0
    %114 = vmatprep.subr.mxu0 0.0
    %115 = vmatpush1.msra.mxu0 0.0
    %116 = vmatprep.subr.mxu0 0.0
    %117 = vmatpush1.msra.mxu0 0.0
    %118 = vmatprep.subr.mxu0 0.0
    %119 = vmatpush1.msra.mxu0 0.0
    %120 = vmatprep.subr.mxu0 0.0
    %121 = vmatpush1.msra.mxu0 0.0
    %122 = vmatprep.subr.mxu0 0.0
    %123 = vmatpush1.msra.mxu0 0.0
    %124 = vmatprep.subr.mxu0 0.0
    %125 = vmatpush1.msra.mxu0 0.0
    %126 = vmatprep.mubr.f32.mxu0 0.0
    %127 = vmatmul.mubr.f32.gmra.mrb[0].mxu0 %v60
    %v128 = vpop.f32.mrb[0].mxu0
    %v129 = vadd.f32 %v57, %v128
    %v130 = vpop.f32.mrb[0].mxu0
    %131 = vdwg.mxu0
    %v132 = vmax.f32 %v129, 0.0
    %v133 = vld [vmem:[#allocation2] sm:$0xff]
    %v134 = vld [vmem:[#allocation2 + $0x8] sm:$0xff]
    %v135 = vld [vmem:[#allocation2 + $0x10] sm:$0xff]
    %v136 = vld [vmem:[#allocation2 + $0x18] sm:$0xff]
    %v137 = vld [vmem:[#allocation2 + $0x20] sm:$0xff]
    %v138 = vld [vmem:[#allocation2 + $0x28] sm:$0xff]
    %v139 = vld [vmem:[#allocation2 + $0x30] sm:$0xff]
    %v140 = vld [vmem:[#allocation2 + $0x38] sm:$0xff]
    %v141 = vld [vmem:[#allocation2 + $0x40] sm:$0xff]
    %v142 = vld [vmem:[#allocation2 + $0x48] sm:$0xff]
    %v143 = vld [vmem:[#allocation2 + $0x50] sm:$0xff]
    %v144 = vld [vmem:[#allocation2 + $0x58] sm:$0xff]
    %v145 = vld [vmem:[#allocation2 + $0x60] sm:$0xff]
    %v146 = vld [vmem:[#allocation2 + $0x68] sm:$0xff]
    %v147 = vld [vmem:[#allocation2 + $0x70] sm:$0xff]
    %v148 = vld [vmem:[#allocation2 + $0x78] sm:$0xff]
    %v149 = vlaneseq
    %v150 = vshrl.u32 %v149, 7
    %v151 = vsub.s32 0, %v150
    %v152 = vrot.slane %v51, %v151
    %153 = vmatprep.subr.mxu0 0.0
    %154 = vmatpush1.msra.mxu0 %v133
    %155 = vmatprep.subr.mxu0 0.0
    %156 = vmatpush1.msra.mxu0 %v134
    %157 = vmatprep.subr.mxu0 0.0
    %158 = vmatpush1.msra.mxu0 %v135
    %159 = vmatprep.subr.mxu0 0.0
    %160 = vmatpush1.msra.mxu0 %v136
    %161 = vmatprep.subr.mxu0 0.0
    %162 = vmatpush1.msra.mxu0 %v137
    %163 = vmatprep.subr.mxu0 0.0
    %164 = vmatpush1.msra.mxu0 %v138
    %165 = vmatprep.subr.mxu0 0.0
    %166 = vmatpush1.msra.mxu0 %v139
    %167 = vmatprep.subr.mxu0 0.0
    %168 = vmatpush1.msra.mxu0 %v140
    %169 = vmatprep.subr.mxu0 0.0
    %170 = vmatpush1.msra.mxu0 %v141
    %171 = vmatprep.subr.mxu0 0.0
    %172 = vmatpush1.msra.mxu0 %v142
    %173 = vmatprep.subr.mxu0 0.0
    %174 = vmatpush1.msra.mxu0 %v143
    %175 = vmatprep.subr.mxu0 0.0
    %176 = vmatpush1.msra.mxu0 %v144
    %177 = vmatprep.subr.mxu0 0.0
    %178 = vmatpush1.msra.mxu0 %v145
    %179 = vmatprep.subr.mxu0 0.0
    %180 = vmatpush1.msra.mxu0 %v146
    %181 = vmatprep.subr.mxu0 0.0
    %182 = vmatpush1.msra.mxu0 %v147
    %183 = vmatprep.subr.mxu0 0.0
    %184 = vmatpush1.msra.mxu0 %v148
    %185 = vmatprep.subr.mxu0 0.0
    %186 = vmatpush1.msra.mxu0 0.0
    %187 = vmatprep.subr.mxu0 0.0
    %188 = vmatpush1.msra.mxu0 0.0
    %189 = vmatprep.subr.mxu0 0.0
    %190 = vmatpush1.msra.mxu0 0.0
    %191 = vmatprep.subr.mxu0 0.0
    %192 = vmatpush1.msra.mxu0 0.0
    %193 = vmatprep.subr.mxu0 0.0
    %194 = vmatpush1.msra.mxu0 0.0
    %195 = vmatprep.subr.mxu0 0.0
    %196 = vmatpush1.msra.mxu0 0.0
    %197 = vmatprep.subr.mxu0 0.0
    %198 = vmatpush1.msra.mxu0 0.0
    %199 = vmatprep.subr.mxu0 0.0
    %200 = vmatpush1.msra.mxu0 0.0
    %201 = vmatprep.subr.mxu0 0.0
    %202 = vmatpush1.msra.mxu0 0.0
    %203 = vmatprep.subr.mxu0 0.0
    %204 = vmatpush1.msra.mxu0 0.0
    %205 = vmatprep.subr.mxu0 0.0
    %206 = vmatpush1.msra.mxu0 0.0
    %207 = vmatprep.subr.mxu0 0.0
    %208 = vmatpush1.msra.mxu0 0.0
    %209 = vmatprep.subr.mxu0 0.0
    %210 = vmatpush1.msra.mxu0 0.0
    %211 = vmatprep.subr.mxu0 0.0
    %212 = vmatpush1.msra.mxu0 0.0
    %213 = vmatprep.subr.mxu0 0.0
    %214 = vmatpush1.msra.mxu0 0.0
    %215 = vmatprep.subr.mxu0 0.0
    %216 = vmatpush1.msra.mxu0 0.0
    %217 = vmatprep.mubr.f32.mxu0 0.0
    %218 = vmatmul.mubr.f32.gmra.mrb[0].mxu0 %v132
    %v219 = vpop.f32.mrb[0].mxu0
    %v220 = vadd.f32 %v152, %v219
    %v221 = vpop.f32.mrb[0].mxu0
    %222 = vdwg.mxu0
    %v223 = vmax.f32 %v220, 0.0
    %v224 = vld [vmem:[#allocation4] sm:$0xff]
    %v225 = vld [vmem:[%s5] sm:$0xff]
    %227 = vset.pattern.permute.xlu0 0
    %228 = vperm.xlu0 %227, %v225
    %v229 = vpop.permute.xlu0 %228
    %231 = vmatprep.subr.mxu0 0.0
    %232 = vmatpush1.xpose.msra.mxu0 %v223
    %233 = vmatprep.subr.mxu0 0.0
    %234 = vmatpush1.xpose.msra.mxu0 0.0
    %235 = vmatprep.subr.mxu0 0.0
    %236 = vmatpush1.xpose.msra.mxu0 0.0
    %237 = vmatprep.subr.mxu0 0.0
    %238 = vmatpush1.xpose.msra.mxu0 0.0
    %239 = vmatprep.subr.mxu0 0.0
    %240 = vmatpush1.xpose.msra.mxu0 0.0
    %241 = vmatprep.subr.mxu0 0.0
    %242 = vmatpush1.xpose.msra.mxu0 0.0
    %243 = vmatprep.subr.mxu0 0.0
    %244 = vmatpush1.xpose.msra.mxu0 0.0
    %245 = vmatprep.subr.mxu0 0.0
    %246 = vmatpush1.xpose.msra.mxu0 0.0
    %247 = vmatprep.subr.mxu0 0.0
    %248 = vmatpush1.xpose.msra.mxu0 0.0
    %249 = vmatprep.subr.mxu0 0.0
    %250 = vmatpush1.xpose.msra.mxu0 0.0
    %251 = vmatprep.subr.mxu0 0.0
    %252 = vmatpush1.xpose.msra.mxu0 0.0
    %253 = vmatprep.subr.mxu0 0.0
    %254 = vmatpush1.xpose.msra.mxu0 0.0
    %255 = vmatprep.subr.mxu0 0.0
    %256 = vmatpush1.xpose.msra.mxu0 0.0
    %257 = vmatprep.subr.mxu0 0.0
    %258 = vmatpush1.xpose.msra.mxu0 0.0
    %259 = vmatprep.subr.mxu0 0.0
    %260 = vmatpush1.xpose.msra.mxu0 0.0
    %261 = vmatprep.subr.mxu0 0.0
    %262 = vmatpush1.xpose.msra.mxu0 0.0
    %263 = vmatprep.subr.mxu0 0.0
    %264 = vmatpush1.xpose.msra.mxu0 0.0
    %265 = vmatprep.subr.mxu0 0.0
    %266 = vmatpush1.xpose.msra.mxu0 0.0
    %267 = vmatprep.subr.mxu0 0.0
    %268 = vmatpush1.xpose.msra.mxu0 0.0
    %269 = vmatprep.subr.mxu0 0.0
    %270 = vmatpush1.xpose.msra.mxu0 0.0
    %271 = vmatprep.subr.mxu0 0.0
    %272 = vmatpush1.xpose.msra.mxu0 0.0
    %273 = vmatprep.subr.mxu0 0.0
    %274 = vmatpush1.xpose.msra.mxu0 0.0
    %275 = vmatprep.subr.mxu0 0.0
    %276 = vmatpush1.xpose.msra.mxu0 0.0
    %277 = vmatprep.subr.mxu0 0.0
    %278 = vmatpush1.xpose.msra.mxu0 0.0
    %279 = vmatprep.subr.mxu0 0.0
    %280 = vmatpush1.xpose.msra.mxu0 0.0
    %281 = vmatprep.subr.mxu0 0.0
    %282 = vmatpush1.xpose.msra.mxu0 0.0
    %283 = vmatprep.subr.mxu0 0.0
    %284 = vmatpush1.xpose.msra.mxu0 0.0
    %285 = vmatprep.subr.mxu0 0.0
    %286 = vmatpush1.xpose.msra.mxu0 0.0
    %287 = vmatprep.subr.mxu0 0.0
    %288 = vmatpush1.xpose.msra.mxu0 0.0
    %289 = vmatprep.subr.mxu0 0.0
    %290 = vmatpush1.xpose.msra.mxu0 0.0
    %291 = vmatprep.subr.mxu0 0.0
    %292 = vmatpush1.xpose.msra.mxu0 0.0
    %293 = vmatprep.subr.mxu0 0.0
    %294 = vmatpush1.xpose.msra.mxu0 0.0
    %295 = vmatprep.mubr.f32.mxu0 0.0
    %296 = vmatmul.mubr.f32.gmra.mrb[0].mxu0 %v224
    %v297 = vpop.f32.mrb[0].mxu0
    %v298 = vadd.f32 %v229, %v297
    %v299 = vpop.f32.mrb[0].mxu0
    %300 = vdwg.mxu0
    %vm301 = vcmask 64512
    %302 = vst.msk [vmem:[%s6] sm:$0xff] %vm301, %v298
    // Predicated region
    $region34: #{actor_critic_forward.1} parent=1 // pred_check
      _
    $region35: #{actor_critic_forward.1} parent=1 // pred_check_branch
      %304 = sbr.rel (0) target = $region37
    $region36: #{actor_critic_forward.1} parent=1 // pred_region
      _
    $region37: #{actor_critic_forward.1} parent=1 // pred_fallthru
      _
    // Predicated region
    $region38: #{actor_critic_forward.1} parent=1 // pred_check
      _
    $region39: #{actor_critic_forward.1} parent=1 // pred_check_branch
      %306 = sbr.rel (0) target = $region41
    $region40: #{actor_critic_forward.1} parent=1 // pred_region
      _
    $region41: #{actor_critic_forward.1} parent=1 // pred_fallthru
      _
    %307 = vsyncpa [#allocation3], 1
    %308 = vsyncpa [#allocation5], 1

</llo_original>
